<compile_context>
chip_gen: v6e
topology: v6e:2x2x1
jax: 0.10.0
libtpu: 0.0.40
codegen_flags: <defaults>
</compile_context>

<pallas_src>
import jax
import jax.numpy as jnp
from jax.experimental import pallas as pl
from jax.experimental.pallas import tpu as pltpu

_LANE = 128
_SUB = 8


def _round_up(x, m):
    return (x + m - 1) // m * m


def _get_vmem_capacity():
    try:
        info = pltpu.get_tpu_info()
        cap = getattr(info, "vmem_capacity_bytes", None)
        if cap:
            return int(cap)
    except Exception:
        pass
    return 128 * 1024 * 1024  # v5e / v6e


def _choose_tiles(B, F, vmem_cap):
    """Pick (TB, TK): batch tile and feature tile, sized by padded bytes."""
    f32 = 4
    f_pad = _round_up(F, _LANE)

    # Per-buffer budget for the streamed x tile (it is double-buffered).
    x_tile_budget = min(vmem_cap // 6, 12 * 1024 * 1024)
    # ~4 MiB tiles sit at the measured HBM-roofline sweet spot; use bigger
    # tiles on v7x (64 MiB VMEM => faster HBM, fixed per-step overhead bites).
    target = 8 * 1024 * 1024 if vmem_cap <= 64 * 1024 * 1024 else 4 * 1024 * 1024
    target = min(target, x_tile_budget)

    row_bytes = f32 * f_pad                      # lane-padded bytes of one x row
    if row_bytes * 64 <= target:
        tk = F                                   # whole feature dim per step
        tb = (target // row_bytes) // _SUB * _SUB
    else:
        tb = 256                                 # wide F: tile the reduction axis
        tk = max(_LANE, (target // (f32 * tb)) // _LANE * _LANE)
        tk = min(tk, f_pad)

    if tb >= B:
        tb = B                                   # single full-dim block is always legal
    else:
        tb = max(_SUB, (tb // _SUB) * _SUB)
    # Keep >= 2 batch tiles so both v7x TensorCores get DMA streams to issue
    # (no effect on single-TC v5e/v6e).
    if B >= 4 * _SUB and pl.cdiv(B, tb) < 2:
        tb = _round_up(pl.cdiv(B, 2), _SUB)
    return tb, tk


def _make_linear_kernel(F, tk, tb):
    ragged_k = (F % tk) != 0

    def kernel(x_ref, w_ref, b_ref, o_ref, acc_ref):
        k = pl.program_id(1)

        @pl.when(k == 0)
        def _init():
            acc_ref[...] = jnp.zeros_like(acc_ref)

        x = x_ref[...]
        w = w_ref[...]
        if ragged_k:
            # Partial last feature tile: its padded columns hold arbitrary VMEM
            # bytes; zero them in both operands before accumulating.
            col = jax.lax.broadcasted_iota(jnp.int32, (1, tk), 1) + k * tk
            valid = col < F
            w = jnp.where(valid, w, 0.0)
            x = jnp.where(valid, x, 0.0)

        # (1, TK) . (TB, TK)^T -> (1, TB): lane-dense trans-B GEMV on the MXU.
        acc_ref[...] += jax.lax.dot_general(
            w, x, (((1,), (1,)), ((), ())),
            preferred_element_type=jnp.float32)

        @pl.when(k == pl.num_programs(1) - 1)
        def _finalize():
            o_ref[...] = (acc_ref[...] + b_ref[0, 0]).reshape(1, 1, tb)

    return kernel


def linear_forward(x, w, b):
    """y = x @ W.T + b  (PyTorch nn.Linear(F, 1)); x:(B,F), w:(1,F), b:(1,1)."""
    B, F = x.shape
    assert w.shape == (1, F) and b.shape == (1, 1)

    vmem_cap = _get_vmem_capacity()
    tb, tk = _choose_tiles(B, F, vmem_cap)
    n_b = pl.cdiv(B, tb)
    n_k = pl.cdiv(F, tk)

    # Lane/sublane-padded per-step VMEM working set (double-buffered bufs).
    tk_pad = _round_up(tk, _LANE)
    tb_lane = _round_up(tb, _LANE)
    tb_sub = _round_up(tb, _SUB)
    working = 4 * (2 * tb_sub * tk_pad          # x
                   + 2 * _SUB * tk_pad          # w (sublane-padded)
                   + 2 * _SUB * tb_lane         # output block
                   + _SUB * tb_lane)            # accumulator scratch
    vmem_limit = None
    if working > 12 * 1024 * 1024:
        vmem_limit = int(min(vmem_cap * 3 // 4, working + 8 * 1024 * 1024))

    out = pl.pallas_call(
        _make_linear_kernel(F, tk, tb),
        out_shape=jax.ShapeDtypeStruct((n_b, 1, tb), jnp.float32),
        grid_spec=pltpu.PrefetchScalarGridSpec(
            num_scalar_prefetch=0,
            grid=(n_b, n_k),
            in_specs=[
                pl.BlockSpec((tb, tk), lambda i, k: (i, k)),            # x: streamed
                pl.BlockSpec((1, tk), lambda i, k: (0, k)),             # w: resident per k
                pl.BlockSpec(memory_space=pltpu.MemorySpace.SMEM),      # b: scalar
            ],
            out_specs=pl.BlockSpec((1, 1, tb), lambda i, k: (i, 0, 0)),
            scratch_shapes=[pltpu.VMEM((1, tb), jnp.float32)],
        ),
        compiler_params=pltpu.CompilerParams(
            dimension_semantics=("parallel", "arbitrary"),
            vmem_limit_bytes=vmem_limit,
        ),
        cost_estimate=pl.CostEstimate(
            flops=2 * B * F, transcendentals=0,
            bytes_accessed=4 * (B * F + F + B)),
    )(x, w, b)

    y = out.reshape(n_b * tb)
    if n_b * tb != B:
        y = y[:B]
    return y.reshape(B, 1)


class Network:
    """JAX/Pallas equivalent of PyTorch Network(nn.Linear(n_feature, 1))."""

    def __init__(self, n_feature, key):
        kw, kb = jax.random.split(key)
        # nn.Linear default init: U(-1/sqrt(F), 1/sqrt(F)) for weight and bias.
        bound = 1.0 / jnp.sqrt(jnp.float32(n_feature))
        self.w = jax.random.uniform(
            kw, (1, n_feature), dtype=jnp.float32, minval=-bound, maxval=bound)
        self.b = jax.random.uniform(
            kb, (1, 1), dtype=jnp.float32, minval=-bound, maxval=bound)

    def __call__(self, x):
        return linear_forward(x, self.w, self.b)


def _ref_forward(x, w, b):
    # Pure-f32 VPU reference (avoids MXU default-precision ambiguity).
    return jnp.sum(x * w[0], axis=-1, keepdims=True) + b[0, 0]


if __name__ == "__main__":
    key = jax.random.PRNGKey(0)
    k_params, k1, k2, k3 = jax.random.split(key, 4)

    # 1) Small canonical shape: single tile.
    batch, n_feature = 8, 32
    net = Network(n_feature, k_params)
    x = jax.random.normal(k1, (batch, n_feature), dtype=jnp.float32)
    y = jax.block_until_ready(net(x))
    assert y.shape == (batch, 1)
    assert jnp.allclose(y, _ref_forward(x, net.w, net.b), atol=1e-4, rtol=1e-4)

    # 2) Multi-tile batch with a ragged last tile (partial block, no jnp.pad).
    x2 = jax.random.normal(k2, (1000, n_feature), dtype=jnp.float32)
    y2 = jax.block_until_ready(net(x2))
    assert y2.shape == (1000, 1)
    assert jnp.allclose(y2, _ref_forward(x2, net.w, net.b), atol=1e-4, rtol=1e-4)

    # 3) Wide feature dim: exercises the reduction-axis grid, the f32
    #    accumulator and the ragged-K mask.
    nf3 = 70000
    net3 = Network(nf3, k_params)
    x3 = jax.random.normal(k3, (64, nf3), dtype=jnp.float32)
    y3 = jax.block_until_ready(net3(x3))
    assert y3.shape == (64, 1)
    assert jnp.allclose(y3, _ref_forward(x3, net3.w, net3.b), atol=3e-4, rtol=3e-4)

    print("KERNEL_OK")
</pallas_src>

<mosaic_0001>
module attributes {stable_mosaic.version = 11 : i64} {
  func.func @kernel(%arg0: i32, %arg1: i32, %arg2: memref<8x32xf32, #tpu.memory_space<vmem>>, %arg3: memref<1x32xf32, #tpu.memory_space<vmem>>, %arg4: memref<1x1xf32, #tpu.memory_space<smem>>, %arg5: memref<1x1x8xf32, #tpu.memory_space<vmem>>, %arg6: memref<1x8xf32, #tpu.memory_space<vmem>>) attributes {dimension_semantics = [#tpu.dimension_semantics<parallel>, #tpu.dimension_semantics<arbitrary>], iteration_bounds = array<i64: 1, 1>, scalar_prefetch = 0 : i64, scratch_operands = 1 : i64, tpu.core_type = #tpu.core_type<tc>, window_params = [{transform_indices = @transform_0, window_bounds = array<i64: 8, 32>}, {transform_indices = @transform_1, window_bounds = array<i64: 1, 32>}, {transform_indices = @transform_2, window_bounds = array<i64: 1, 1>}, {transform_indices = @transform_3, window_bounds = array<i64: 1, 1, 8>}]} {
    %c0_i32 = arith.constant 0 : i32
    %0 = arith.cmpi eq, %arg1, %c0_i32 : i32
    %1 = arith.extui %0 : i1 to i32
    %c0_i32_0 = arith.constant 0 : i32
    %2 = arith.cmpi ne, %1, %c0_i32_0 : i32
    scf.if %2 {
      %cst_10 = arith.constant 0.000000e+00 : f32
      %12 = vector.broadcast %cst_10 : f32 to vector<1x8xf32>
      %c0_11 = arith.constant 0 : index
      %c0_12 = arith.constant 0 : index
      %13 = vector.load %arg6[%c0_11, %c0_12] : memref<1x8xf32, #tpu.memory_space<vmem>>, vector<1x8xf32>
      tpu.vector_store %arg6[%c0_11, %c0_12], %12 {strides = array<i32>} : memref<1x8xf32, #tpu.memory_space<vmem>>, vector<1x8xf32>,
    } else {
    }
    %c0 = arith.constant 0 : index
    %c0_1 = arith.constant 0 : index
    %3 = vector.load %arg2[%c0, %c0_1] : memref<8x32xf32, #tpu.memory_space<vmem>>, vector<8x32xf32>
    %c0_2 = arith.constant 0 : index
    %c0_3 = arith.constant 0 : index
    %4 = vector.load %arg3[%c0_2, %c0_3] : memref<1x32xf32, #tpu.memory_space<vmem>>, vector<1x32xf32>
    %c0_4 = arith.constant 0 : index
    %c0_5 = arith.constant 0 : index
    %5 = vector.load %arg6[%c0_4, %c0_5] : memref<1x8xf32, #tpu.memory_space<vmem>>, vector<1x8xf32>
    %cst = arith.constant dense<0.000000e+00> : vector<1x8xf32>
    %6 = tpu.matmul %4, %3, %cst {dimension_numbers = #tpu.dot_dimension_numbers<[1], [1], [0], [0], [0, 0, 1, 0], [], []>} : vector<1x32xf32>, vector<8x32xf32>, vector<1x8xf32> -> vector<1x8xf32>
    %7 = arith.addf %5, %6 : vector<1x8xf32>
    %c0_6 = arith.constant 0 : index
    %c0_7 = arith.constant 0 : index
    %8 = vector.load %arg6[%c0_6, %c0_7] : memref<1x8xf32, #tpu.memory_space<vmem>>, vector<1x8xf32>
    tpu.vector_store %arg6[%c0_6, %c0_7], %7 {strides = array<i32>} : memref<1x8xf32, #tpu.memory_space<vmem>>, vector<1x8xf32>,
    %c0_i32_8 = arith.constant 0 : i32
    %9 = arith.cmpi eq, %arg1, %c0_i32_8 : i32
    %10 = arith.extui %9 : i1 to i32
    %c0_i32_9 = arith.constant 0 : i32
    %11 = arith.cmpi ne, %10, %c0_i32_9 : i32
    scf.if %11 {
      %c0_10 = arith.constant 0 : index
      %c0_11 = arith.constant 0 : index
      %12 = vector.load %arg6[%c0_10, %c0_11] : memref<1x8xf32, #tpu.memory_space<vmem>>, vector<1x8xf32>
      %c0_12 = arith.constant 0 : index
      %c0_13 = arith.constant 0 : index
      %13 = memref.load %arg4[%c0_12, %c0_13] : memref<1x1xf32, #tpu.memory_space<smem>>
      %14 = vector.broadcast %13 : f32 to vector<1x8xf32>
      %15 = arith.addf %12, %14 : vector<1x8xf32>
      %16 = vector.shape_cast %15 : vector<1x8xf32> to vector<1x1x8xf32>
      %c0_14 = arith.constant 0 : index
      %c0_15 = arith.constant 0 : index
      %c0_16 = arith.constant 0 : index
      %17 = vector.load %arg5[%c0_14, %c0_15, %c0_16] : memref<1x1x8xf32, #tpu.memory_space<vmem>>, vector<1x1x8xf32>
      tpu.vector_store %arg5[%c0_14, %c0_15, %c0_16], %16 {strides = array<i32>} : memref<1x1x8xf32, #tpu.memory_space<vmem>>, vector<1x1x8xf32>,
    } else {
    }
    return
  }
  func.func @transform_0(%arg0: i32, %arg1: i32) -> (i32, i32) {
    %c0_i32 = arith.constant 0 : i32
    return %arg0, %arg1 : i32, i32
  }
  func.func @transform_1(%arg0: i32, %arg1: i32) -> (i32, i32) {
    %c0_i32 = arith.constant 0 : i32
    %c0_i32_0 = arith.constant 0 : i32
    return %c0_i32, %arg1 : i32, i32
  }
  func.func @transform_2(%arg0: i32, %arg1: i32) -> (i32, i32) {
    %c0_i32 = arith.constant 0 : i32
    %c0_i32_0 = arith.constant 0 : i32
    %c0_i32_1 = arith.constant 0 : i32
    return %c0_i32, %c0_i32_0 : i32, i32
  }
  func.func @transform_3(%arg0: i32, %arg1: i32) -> (i32, i32, i32) {
    %c0_i32 = arith.constant 0 : i32
    %c0_i32_0 = arith.constant 0 : i32
    %c0_i32_1 = arith.constant 0 : i32
    return %arg0, %c0_i32, %c0_i32_0 : i32, i32, i32
  }
}

</mosaic_0001>

<llo_original>
// kernel: tpu_custom_call.1
$region0: #{tpu_custom_call.1}
  #allocation0 [shape = 'u32[]', space=smem, size = 0x4, offset = 0x4, fixed_abs, tag = 'smem constant byte address 0x4 - core index']
  #allocation1 [shape = 'u32[144,128]{1,0:T(1,128)}', space=vmem, size = 0x12000, scoped, tag = 'internal scratch']
  #allocation2 [shape = 'f32[1,8]{1,0:T(1,128)}', space=vmem, size = 0x200, scoped, tag = 'scratch operand']
  #allocation3 [shape = 'f32[1,1]{1,0:T(1,128)S(6)}', space=smem, size = 0x200, scoped, tag = 'scoped memory for tpu_custom_call.1']
  %s0 = inlined_call_operand.hbm [shape: f32[8,32], index: 0, kind: input, shape index: {}]
  %s1 = inlined_call_operand.vmem [shape: f32[1,32], index: 1, kind: input, shape index: {}]
  %s2 = inlined_call_operand.<no memory space> [shape: f32[1,1], index: 2, kind: input, shape index: {}]
  %s3 = inlined_call_operand.hbm [shape: f32[1,1,8], index: 3, kind: output, shape index: {}]
  %s4 = sld [smem:[#allocation0]]
  $region34: #{tpu_custom_call.1} parent=0
    _
  %s6 = ssub.s32 1, %s4
  %s7 = scalar_select 0, %s6, %s4
  %8 = sst [smem:[#allocation3]] %s2
  $region1: #{tpu_custom_call.1} parent=0
    #allocation4 [shape = 'u8[4096]{0}', space=vmem, size = 0x1000, scoped, tag = 'input window, operand 0, single buffered']
    #allocation5 [shape = 's32[1]{0}', space=sflag, size = 0x4, scoped, tag = 'scoped memory for tpu_custom_call.1']
    #allocation6 [shape = 's32[1]{0}', space=sflag, size = 0x4, scoped, tag = 'scoped memory for tpu_custom_call.1']
    #allocation7 [shape = 'u8[512]{0}', space=vmem, size = 0x400, scoped, tag = 'output window, operand 0, single buffered']
    %9 = vsyncpa [#allocation5], 0
    %10 = vsyncpa [#allocation6], 0
    // Predicated region
    $region2: #{tpu_custom_call.1} parent=1 // pred_check
      _
    $region3: #{tpu_custom_call.1} parent=1 // pred_check_branch
      %12 = sbr.rel (0) target = $region5
    $region4: #{tpu_custom_call.1} parent=1 // pred_region
      %s14 = ssub.s32 128, 128
      %15 = vsyncadd [#allocation5], %s14
      %s17 = sshll.u32 [#allocation4], 4
      %s18 = int_to_ptr.vmem [resolvable:$true] %s17
      %20 = dma.hbm_to_vmem [thread:$0]  %s0, 128, %s18, [#allocation5]
    $region5: #{tpu_custom_call.1} parent=1 // pred_fallthru
      _
    // Predicated region
    $region6: #{tpu_custom_call.1} parent=1 // pred_check
      _
    $region7: #{tpu_custom_call.1} parent=1 // pred_check_branch
      %22 = sbr.rel (0) target = $region9
    $region8: #{tpu_custom_call.1} parent=1 // pred_region
      _
    $region9: #{tpu_custom_call.1} parent=1 // pred_fallthru
      _
    // Predicated region
    $region10: #{tpu_custom_call.1} parent=1 // pred_check
      _
    $region11: #{tpu_custom_call.1} parent=1 // pred_check_branch
      %24 = sbr.rel (0) target = $region13
    $region12: #{tpu_custom_call.1} parent=1 // pred_region
      _
    $region13: #{tpu_custom_call.1} parent=1 // pred_fallthru
      _
    // Predicated region
    $region14: #{tpu_custom_call.1} parent=1 // pred_check
      _
    $region15: #{tpu_custom_call.1} parent=1 // pred_check_branch
      %26 = sbr.rel (0) target = $region17
    $region16: #{tpu_custom_call.1} parent=1 // pred_region
      %27 = dma.done [#allocation5], 128
    $region17: #{tpu_custom_call.1} parent=1 // pred_fallthru
      _
    %p28 = scmp.eq.s32.totalorder 0, 0
    // Predicated region
    $region18: #{tpu_custom_call.1} parent=1 // pred_check
      %p29 = pneg %p28
    $region19: #{tpu_custom_call.1} parent=1 // pred_check_branch
      %31 = sbr.rel (%p29) target = $region21
    $region20: #{tpu_custom_call.1} parent=1 // pred_region
      %vm32 = vcmask 57344
      %33 = vst.msk [vmem:[#allocation2] sm:$0x1] %vm32, 0.0
    $region21: #{tpu_custom_call.1} parent=1 // pred_fallthru
      _
    %v34 = vld [vmem:[#allocation4] sm:$0xff]
    %v35 = vld [vmem:[%s1] sm:$0x1]
    %v36 = vld [vmem:[#allocation2] sm:$0x1]
    %vm37 = vcmask 261120
    %v39 = vsel %vm37, %v35, 0
    %v42 = vsel %vm37, %v34, 0
    %44 = vmatprep.subr.mxu0 0.0
    %45 = vmatpush1.xpose.msra.mxu0 0.0
    %46 = vmatprep.subr.mxu0 0.0
    %47 = vmatpush1.xpose.msra.mxu0 0.0
    %48 = vmatprep.subr.mxu0 0.0
    %49 = vmatpush1.xpose.msra.mxu0 0.0
    %50 = vmatprep.subr.mxu0 0.0
    %51 = vmatpush1.xpose.msra.mxu0 0.0
    %52 = vmatprep.subr.mxu0 0.0
    %53 = vmatpush1.xpose.msra.mxu0 0.0
    %54 = vmatprep.subr.mxu0 0.0
    %55 = vmatpush1.xpose.msra.mxu0 0.0
    %56 = vmatprep.subr.mxu0 0.0
    %57 = vmatpush1.xpose.msra.mxu0 0.0
    %58 = vmatprep.subr.mxu0 0.0
    %59 = vmatpush1.xpose.msra.mxu0 0.0
    %60 = vmatprep.subr.mxu0 0.0
    %61 = vmatpush1.xpose.msra.mxu0 0.0
    %62 = vmatprep.subr.mxu0 0.0
    %63 = vmatpush1.xpose.msra.mxu0 0.0
    %64 = vmatprep.subr.mxu0 0.0
    %65 = vmatpush1.xpose.msra.mxu0 0.0
    %66 = vmatprep.subr.mxu0 0.0
    %67 = vmatpush1.xpose.msra.mxu0 0.0
    %68 = vmatprep.subr.mxu0 0.0
    %69 = vmatpush1.xpose.msra.mxu0 0.0
    %70 = vmatprep.subr.mxu0 0.0
    %71 = vmatpush1.xpose.msra.mxu0 0.0
    %72 = vmatprep.subr.mxu0 0.0
    %73 = vmatpush1.xpose.msra.mxu0 0.0
    %74 = vmatprep.subr.mxu0 0.0
    %75 = vmatpush1.xpose.msra.mxu0 %v42
    %76 = vmatprep.subr.mxu0 0.0
    %77 = vmatpush2.xpose.msra.mxu0 0.0
    %78 = vmatprep.subr.mxu0 0.0
    %79 = vmatpush2.xpose.msra.mxu0 0.0
    %80 = vmatprep.subr.mxu0 0.0
    %81 = vmatpush2.xpose.msra.mxu0 0.0
    %82 = vmatprep.subr.mxu0 0.0
    %83 = vmatpush2.xpose.msra.mxu0 0.0
    %84 = vmatprep.subr.mxu0 0.0
    %85 = vmatpush2.xpose.msra.mxu0 0.0
    %86 = vmatprep.subr.mxu0 0.0
    %87 = vmatpush2.xpose.msra.mxu0 0.0
    %88 = vmatprep.subr.mxu0 0.0
    %89 = vmatpush2.xpose.msra.mxu0 0.0
    %90 = vmatprep.subr.mxu0 0.0
    %91 = vmatpush2.xpose.msra.mxu0 0.0
    %92 = vmatprep.subr.mxu0 0.0
    %93 = vmatpush2.xpose.msra.mxu0 0.0
    %94 = vmatprep.subr.mxu0 0.0
    %95 = vmatpush2.xpose.msra.mxu0 0.0
    %96 = vmatprep.subr.mxu0 0.0
    %97 = vmatpush2.xpose.msra.mxu0 0.0
    %98 = vmatprep.subr.mxu0 0.0
    %99 = vmatpush2.xpose.msra.mxu0 0.0
    %100 = vmatprep.subr.mxu0 0.0
    %101 = vmatpush2.xpose.msra.mxu0 0.0
    %102 = vmatprep.subr.mxu0 0.0
    %103 = vmatpush2.xpose.msra.mxu0 0.0
    %104 = vmatprep.subr.mxu0 0.0
    %105 = vmatpush2.xpose.msra.mxu0 0.0
    %106 = vmatprep.subr.mxu0 0.0
    %107 = vmatpush2.xpose.msra.mxu0 0.0
    %108 = vmatprep.mubr.f32.mxu0 0.0
    %109 = vmatmul.mubr.f32.gmra.mxu0 %v39
    %v110 = vpop.f32.mrf.mxu0
    %v111 = vadd.f32 0.0, %v110
    %v112 = vpop.f32.mrf.mxu0
    %113 = vdwg.mxu0
    %v114 = vadd.f32 %v36, %v111
    %vm115 = vcmask 57344
    %116 = vst.msk [vmem:[#allocation2] sm:$0x1] %vm115, %v114
    // Predicated region
    $region22: #{tpu_custom_call.1} parent=1 // pred_check
      %p117 = pneg %p28
    $region23: #{tpu_custom_call.1} parent=1 // pred_check_branch
      %119 = sbr.rel (%p117) target = $region25
    $region24: #{tpu_custom_call.1} parent=1 // pred_region
      %v120 = vld [vmem:[#allocation2] sm:$0x1]
      %s121 = sld [smem:[#allocation3]]
      %v122 = vstv %s121
      %v123 = vadd.f32 %v120, %v122
      %124 = vst.msk [vmem:[#allocation7] sm:$0x1] %vm115, %v123
    $region25: #{tpu_custom_call.1} parent=1 // pred_fallthru
      _
    // Predicated region
    $region26: #{tpu_custom_call.1} parent=1 // pred_check
      _
    $region27: #{tpu_custom_call.1} parent=1 // pred_check_branch
      %126 = sbr.rel (0) target = $region29
    $region28: #{tpu_custom_call.1} parent=1 // pred_region
      %s128 = ssub.s32 16, 16
      %129 = vsyncadd [#allocation6], %s128
      %s131 = sshll.u32 [#allocation7], 4
      %s132 = int_to_ptr.vmem [resolvable:$true] %s131
      %134 = dma.vmem_to_hbm [thread:$0]  %s132, 16, %s3, [#allocation6]
    $region29: #{tpu_custom_call.1} parent=1 // pred_fallthru
      _
    // Predicated region
    $region30: #{tpu_custom_call.1} parent=1 // pred_check
      _
    $region31: #{tpu_custom_call.1} parent=1 // pred_check_branch
      %136 = sbr.rel (0) target = $region33
    $region32: #{tpu_custom_call.1} parent=1 // pred_region
      %137 = dma.done [#allocation6], 16
    $region33: #{tpu_custom_call.1} parent=1 // pred_fallthru
      _
    %138 = vsyncpa [#allocation5], 1
    %139 = vsyncpa [#allocation6], 1

</llo_original>
